<compile_context>
chip_gen: v7x
topology: tpu7x:2x2x1
jax: 0.10.0
libtpu: 0.0.40
codegen_flags: <defaults>
</compile_context>

<pallas_src>
import jax
import jax.numpy as jnp
from jax.experimental import pallas as pl
from jax.experimental.pallas import tpu as pltpu


def _round_up(a, b):
    return (a + b - 1) // b * b


def _vmem_capacity_bytes():
    try:
        return int(pltpu.get_tpu_info().vmem_capacity_bytes)
    except Exception:
        return 64 * 1024 * 1024  # conservative default (v7x per-TensorCore VMEM)


def _pool_matmul_kernel(x_ref, s_ref, o_ref, acc_ref):
    # x_ref:   (TILE_NC, TILE_LIN)  rows = batch*channel, lanes = input spatial
    # s_ref:   (TILE_LIN, TILE_LO)  pooling-matrix block
    # o_ref:   (TILE_NC, TILE_LO)
    # acc_ref: (TILE_NC, TILE_LO)   f32 accumulator, resident across the k (L_in) axis
    @pl.when(pl.program_id(2) == 0)
    def _():
        acc_ref[...] = jnp.zeros_like(acc_ref)

    acc_ref[...] += jnp.dot(x_ref[...], s_ref[...],
                            preferred_element_type=jnp.float32)

    @pl.when(pl.program_id(2) == pl.num_programs(2) - 1)
    def _():
        o_ref[...] = acc_ref[...].astype(o_ref.dtype)


def _choose_tiles(nc, l_in, l_out_p, in_dsize, out_dsize, budget,
                  max_tile_nc, max_tile_lout):
    """Pick (tile_nc, tile_lin, tile_lo) honoring the (8,128) rule and a VMEM budget."""

    def fp(tnc, tlin, tlo):
        # double-buffered x + S + out tiles, plus the f32 accumulator scratch
        return (2 * tnc * tlin * in_dsize
                + 2 * tlin * tlo * in_dsize
                + 2 * tnc * tlo * out_dsize
                + tnc * tlo * 4)

    tile_nc = min(_round_up(nc, 8), _round_up(max(max_tile_nc, 8), 8))
    tile_lo = min(l_out_p, max(128, (max_tile_lout // 128) * 128))
    tile_lin = l_in  # full contraction dim -> no padding of x in HBM

    # If S fits comfortably, make it fully resident: read from HBM exactly once.
    if (2 * l_in * l_out_p * in_dsize <= budget // 2
            and fp(tile_nc, l_in, l_out_p) <= budget):
        tile_lo = l_out_p

    # Shrink the row tile, then the output tile, while over budget.
    while fp(tile_nc, tile_lin, tile_lo) > budget and tile_nc > 8:
        tile_nc = max(8, _round_up(tile_nc // 2, 8))
    while fp(tile_nc, tile_lin, tile_lo) > budget and tile_lo > 128:
        tile_lo = max(128, ((tile_lo // 2) // 128) * 128)
    # Last resort: tile the L_in reduction axis (requires zero-padding along L_in).
    while fp(tile_nc, tile_lin, tile_lo) > budget and tile_lin > 128:
        tile_lin = max(128, _round_up(tile_lin // 2, 128))

    return tile_nc, tile_lin, tile_lo


def _indexed_average_pool(x, s, l_out, *, max_tile_nc=512, max_tile_lout=512):
    """x: (N, C, L_in); s: (L_in, L_out_p) pooling matrix; returns (N, C, l_out)."""
    n, c, l_in = x.shape
    assert s.shape[0] == l_in
    l_out_p = s.shape[1]
    nc = n * c

    out_dtype = x.dtype
    x = x.astype(s.dtype)  # compute dtype follows the (possibly bf16) pooling matrix
    in_dsize = jnp.dtype(s.dtype).itemsize
    out_dsize = jnp.dtype(out_dtype).itemsize

    vmem_cap = _vmem_capacity_bytes()
    vmem_limit = int(vmem_cap * 0.75)   # raise v5e's 16 MiB default; stay <= 75% everywhere
    budget = int(vmem_limit * 0.85)     # tile-sizing target, headroom for Mosaic internals

    tile_nc, tile_lin, tile_lo = _choose_tiles(
        nc, l_in, l_out_p, in_dsize, out_dsize, budget, max_tile_nc, max_tile_lout)

    n_nc = pl.cdiv(nc, tile_nc)
    n_lo = pl.cdiv(l_out_p, tile_lo)

    # v7x megacore: give both TensorCores work when there is enough of it.
    if n_nc * n_lo == 1 and nc > 8:
        tile_nc = max(8, _round_up(-(-nc // 2), 8))
        n_nc = pl.cdiv(nc, tile_nc)

    x2 = x.reshape(nc, l_in)
    if tile_lin < l_in:
        # L_in-tiled fallback (very large L_in only): zero-pad x and S along L_in so
        # the partial last reduction block contributes exact zeros to the accumulator.
        l_in_pad = _round_up(l_in, tile_lin)
        x2 = jnp.pad(x2, ((0, 0), (0, l_in_pad - l_in)))
        s = jnp.pad(s, ((0, l_in_pad - l_in), (0, 0)))
    else:
        l_in_pad = l_in
    n_k = l_in_pad // tile_lin

    # With a single reduction block, the operand whose block index is constant along the
    # inner parallel axis is fetched from HBM exactly once; re-stream the cheaper one.
    x_bytes = nc * l_in_pad * in_dsize
    s_bytes = l_in_pad * l_out_p * in_dsize
    swap = (n_k == 1) and ((n_lo - 1) * x_bytes < (n_nc - 1) * s_bytes)

    if swap:   # L_out blocks outermost: S read once, x re-streamed (n_lo - 1) times
        grid = (n_lo, n_nc, n_k)
        x_map = lambda j, i, k: (i, k)
        s_map = lambda j, i, k: (k, j)
        o_map = lambda j, i, k: (i, j)
    else:      # NC blocks outermost: x read once, S re-streamed (n_nc - 1) times
        grid = (n_nc, n_lo, n_k)
        x_map = lambda i, j, k: (i, k)
        s_map = lambda i, j, k: (k, j)
        o_map = lambda i, j, k: (i, j)

    out = pl.pallas_call(
        _pool_matmul_kernel,
        out_shape=jax.ShapeDtypeStruct((nc, l_out_p), out_dtype),
        grid_spec=pltpu.PrefetchScalarGridSpec(
            num_scalar_prefetch=0,
            grid=grid,
            in_specs=[
                pl.BlockSpec((tile_nc, tile_lin), x_map),
                pl.BlockSpec((tile_lin, tile_lo), s_map),
            ],
            out_specs=pl.BlockSpec((tile_nc, tile_lo), o_map),
            scratch_shapes=[pltpu.VMEM((tile_nc, tile_lo), jnp.float32)],
        ),
        compiler_params=pltpu.CompilerParams(
            dimension_semantics=("parallel", "parallel", "arbitrary"),
            vmem_limit_bytes=vmem_limit,
        ),
    )(x2, s)

    return out[:, :l_out].reshape(n, c, l_out)


def _build_pooling_matrix(indices, l_in, l_out_pad):
    """S[j, l] = sum_k mask[k, l] * [idx[k, l] == j] / K, zero-padded to l_out_pad cols."""
    indices = jnp.asarray(indices)
    k, l_out = indices.shape
    # prepare_mask equivalent (indexedconv.utils.prepare_mask)
    mask = (indices != -1).astype(jnp.float32)
    idx = jnp.where(indices == -1, 0, indices).astype(jnp.int32)
    cols = jnp.broadcast_to(jnp.arange(l_out, dtype=jnp.int32)[None, :], (k, l_out))
    # NOTE: non-negative indices >= l_in are assumed pre-validated (the scatter drops them).
    s = jnp.zeros((l_in, l_out), jnp.float32).at[idx, cols].add(mask) * (1.0 / k)
    return jnp.pad(s, ((0, 0), (0, l_out_pad - l_out)))


def make_indexed_average_pool2d(indices, l_in, *, compute_dtype=jnp.float32,
                                max_tile_nc=512, max_tile_lout=512):
    """Mirror of the nn.Module: process the static index table ONCE, return forward(x).

    compute_dtype=jnp.bfloat16 halves operand HBM traffic (S entries stay exact for
    power-of-two K); MXU accumulation remains f32 either way.
    """
    indices = jnp.asarray(indices)
    _, l_out = indices.shape
    l_out_pad = _round_up(l_out, 128)  # lane-dense output columns
    s = _build_pooling_matrix(indices, l_in, l_out_pad).astype(compute_dtype)

    @jax.jit
    def forward(x):
        return _indexed_average_pool(x, s, l_out,
                                     max_tile_nc=max_tile_nc,
                                     max_tile_lout=max_tile_lout)

    return forward


def _reference(x, indices):
    mask = (indices != -1).astype(x.dtype)
    idx = jnp.where(indices == -1, 0, indices)
    col = x[..., idx] * mask          # (N, C, K, L_out)
    return jnp.mean(col, axis=2)      # (N, C, L_out)


if __name__ == "__main__":
    # Small deterministic shapes; L_in / L_out deliberately NOT multiples of 128
    # to exercise the unpadded-contraction / partial-block paths.
    N, C, L_in, L_out, K = 2, 4, 160, 72, 4

    # Deterministic stride-2 pooling-like neighbor table, -1 where out of range.
    l = jnp.arange(L_out)
    offsets = jnp.array([-1, 0, 1, 2])
    indices = 2 * l[None, :] + offsets[:, None]                      # (K, L_out)
    indices = jnp.where((indices < 0) | (indices >= L_in), -1, indices).astype(jnp.int32)

    key = jax.random.PRNGKey(0)
    x = jax.random.normal(key, (N, C, L_in), dtype=jnp.float32)

    pool = make_indexed_average_pool2d(indices, L_in)   # S built once, like __init__
    out = jax.block_until_ready(pool(x))

    ref = _reference(x, indices)
    assert out.shape == (N, C, L_out), out.shape
    assert jnp.allclose(out, ref, atol=1e-5, rtol=1e-5), float(jnp.max(jnp.abs(out - ref)))

    print("KERNEL_OK")
</pallas_src>

<mosaic_0001>
module attributes {stable_mosaic.version = 11 : i64} {
  func.func @_pool_matmul_kernel(%arg0: i32, %arg1: i32, %arg2: i32, %arg3: memref<8x160xf32, #tpu.memory_space<vmem>>, %arg4: memref<160x128xf32, #tpu.memory_space<vmem>>, %arg5: memref<8x128xf32, #tpu.memory_space<vmem>>, %arg6: memref<8x128xf32, #tpu.memory_space<vmem>>) attributes {dimension_semantics = [#tpu.dimension_semantics<parallel>, #tpu.dimension_semantics<parallel>, #tpu.dimension_semantics<arbitrary>], iteration_bounds = array<i64: 1, 1, 1>, scalar_prefetch = 0 : i64, scratch_operands = 1 : i64, tpu.core_type = #tpu.core_type<tc>, window_params = [{transform_indices = @transform_0, window_bounds = array<i64: 8, 160>}, {transform_indices = @transform_1, window_bounds = array<i64: 160, 128>}, {transform_indices = @transform_2, window_bounds = array<i64: 8, 128>}]} {
    %c0_i32 = arith.constant 0 : i32
    %0 = arith.cmpi eq, %arg2, %c0_i32 : i32
    %1 = arith.extui %0 : i1 to i32
    %c0_i32_0 = arith.constant 0 : i32
    %2 = arith.cmpi ne, %1, %c0_i32_0 : i32
    scf.if %2 {
      %cst_10 = arith.constant 0.000000e+00 : f32
      %12 = vector.broadcast %cst_10 : f32 to vector<8x128xf32>
      %c0_11 = arith.constant 0 : index
      %c0_12 = arith.constant 0 : index
      %13 = vector.load %arg6[%c0_11, %c0_12] : memref<8x128xf32, #tpu.memory_space<vmem>>, vector<8x128xf32>
      tpu.vector_store %arg6[%c0_11, %c0_12], %12 {strides = array<i32>} : memref<8x128xf32, #tpu.memory_space<vmem>>, vector<8x128xf32>,
    } else {
    }
    %c0 = arith.constant 0 : index
    %c0_1 = arith.constant 0 : index
    %3 = vector.load %arg6[%c0, %c0_1] : memref<8x128xf32, #tpu.memory_space<vmem>>, vector<8x128xf32>
    %c0_2 = arith.constant 0 : index
    %c0_3 = arith.constant 0 : index
    %4 = vector.load %arg3[%c0_2, %c0_3] : memref<8x160xf32, #tpu.memory_space<vmem>>, vector<8x160xf32>
    %c0_4 = arith.constant 0 : index
    %c0_5 = arith.constant 0 : index
    %5 = vector.load %arg4[%c0_4, %c0_5] : memref<160x128xf32, #tpu.memory_space<vmem>>, vector<160x128xf32>
    %cst = arith.constant dense<0.000000e+00> : vector<8x128xf32>
    %6 = tpu.matmul %4, %5, %cst {dimension_numbers = #tpu.dot_dimension_numbers<[1], [0], [0], [1], [0, 0, 1, 1], [], []>} : vector<8x160xf32>, vector<160x128xf32>, vector<8x128xf32> -> vector<8x128xf32>
    %7 = arith.addf %3, %6 : vector<8x128xf32>
    %c0_6 = arith.constant 0 : index
    %c0_7 = arith.constant 0 : index
    %8 = vector.load %arg6[%c0_6, %c0_7] : memref<8x128xf32, #tpu.memory_space<vmem>>, vector<8x128xf32>
    tpu.vector_store %arg6[%c0_6, %c0_7], %7 {strides = array<i32>} : memref<8x128xf32, #tpu.memory_space<vmem>>, vector<8x128xf32>,
    %c0_i32_8 = arith.constant 0 : i32
    %9 = arith.cmpi eq, %arg2, %c0_i32_8 : i32
    %10 = arith.extui %9 : i1 to i32
    %c0_i32_9 = arith.constant 0 : i32
    %11 = arith.cmpi ne, %10, %c0_i32_9 : i32
    scf.if %11 {
      %c0_10 = arith.constant 0 : index
      %c0_11 = arith.constant 0 : index
      %12 = vector.load %arg6[%c0_10, %c0_11] : memref<8x128xf32, #tpu.memory_space<vmem>>, vector<8x128xf32>
      %c0_12 = arith.constant 0 : index
      %c0_13 = arith.constant 0 : index
      %13 = vector.load %arg5[%c0_12, %c0_13] : memref<8x128xf32, #tpu.memory_space<vmem>>, vector<8x128xf32>
      tpu.vector_store %arg5[%c0_12, %c0_13], %12 {strides = array<i32>} : memref<8x128xf32, #tpu.memory_space<vmem>>, vector<8x128xf32>,
    } else {
    }
    return
  }
  func.func @transform_0(%arg0: i32, %arg1: i32, %arg2: i32) -> (i32, i32) {
    %c0_i32 = arith.constant 0 : i32
    return %arg0, %arg2 : i32, i32
  }
  func.func @transform_1(%arg0: i32, %arg1: i32, %arg2: i32) -> (i32, i32) {
    %c0_i32 = arith.constant 0 : i32
    return %arg2, %arg1 : i32, i32
  }
  func.func @transform_2(%arg0: i32, %arg1: i32, %arg2: i32) -> (i32, i32) {
    %c0_i32 = arith.constant 0 : i32
    return %arg0, %arg1 : i32, i32
  }
}

</mosaic_0001>

<llo_original>
// kernel: forward.1
$region0: #{forward.1}
  #allocation0 [shape = 'u32[]', space=smem, size = 0x4, offset = 0x4, fixed_abs, tag = 'smem constant byte address 0x4 - core index']
  #allocation1 [shape = 'u32[144,128]{1,0:T(1,128)}', space=vmem, size = 0x12000, scoped, tag = 'internal scratch']
  #allocation2 [shape = 'f32[8,128]{1,0:T(8,128)}', space=vmem, size = 0x1000, scoped, tag = 'scratch operand']
  %s0 = inlined_call_operand.vmem [shape: f32[8,160], index: 0, kind: input, shape index: {}]
  %s1 = inlined_call_operand.hbm [shape: f32[160,128], index: 1, kind: input, shape index: {}]
  %s2 = inlined_call_operand.hbm [shape: f32[8,128], index: 2, kind: output, shape index: {}]
  %s3 = sld [smem:[#allocation0]]
  $region30: #{forward.1} parent=0
    _
  %s5 = ssub.s32 1, %s3
  %s6 = scalar_select 0, %s5, %s3
  $region1: #{forward.1} parent=0
    #allocation3 [shape = 'u8[81920]{0}', space=vmem, size = 0x14000, scoped, tag = 'input window, operand 1, single buffered']
    #allocation4 [shape = 's32[1]{0}', space=sflag, size = 0x4, scoped, tag = 'scoped memory for forward.1']
    #allocation5 [shape = 's32[1]{0}', space=sflag, size = 0x4, scoped, tag = 'scoped memory for forward.1']
    #allocation6 [shape = 'u8[4096]{0}', space=vmem, size = 0x1000, scoped, tag = 'output window, operand 0, single buffered']
    %7 = vsyncpa [#allocation4], 0
    %8 = vsyncpa [#allocation5], 0
    // Predicated region
    $region2: #{forward.1} parent=1 // pred_check
      _
    $region3: #{forward.1} parent=1 // pred_check_branch
      %10 = sbr.rel (0) target = $region5
    $region4: #{forward.1} parent=1 // pred_region
      _
    $region5: #{forward.1} parent=1 // pred_fallthru
      _
    // Predicated region
    $region6: #{forward.1} parent=1 // pred_check
      _
    $region7: #{forward.1} parent=1 // pred_check_branch
      %12 = sbr.rel (0) target = $region9
    $region8: #{forward.1} parent=1 // pred_region
      %s14 = ssub.s32 2560, 2560
      %15 = vsyncadd [#allocation4], %s14
      %s16 = sshll.u32 [#allocation3], 4
      %s17 = int_to_ptr.vmem [resolvable:$true] %s16
      %22 = dma.hbm_to_vmem [thread:$0]  %s1, 2560, %s17, [#allocation4], 128, 128, 8
    $region9: #{forward.1} parent=1 // pred_fallthru
      _
    // Predicated region
    $region10: #{forward.1} parent=1 // pred_check
      _
    $region11: #{forward.1} parent=1 // pred_check_branch
      %24 = sbr.rel (0) target = $region13
    $region12: #{forward.1} parent=1 // pred_region
      %25 = dma.done [#allocation4], 2560
    $region13: #{forward.1} parent=1 // pred_fallthru
      _
    %p26 = scmp.eq.s32.totalorder 0, 0
    // Predicated region
    $region14: #{forward.1} parent=1 // pred_check
      %p27 = pneg %p26
    $region15: #{forward.1} parent=1 // pred_check_branch
      %29 = sbr.rel (%p27) target = $region17
    $region16: #{forward.1} parent=1 // pred_region
      %30 = vst [vmem:[#allocation2] sm:$0xff] 0.0
    $region17: #{forward.1} parent=1 // pred_fallthru
      _
    %v31 = vld [vmem:[#allocation2] sm:$0xff]
    %v32 = vld [vmem:[%s0] sm:$0xff]
    %v33 = vld [vmem:[%s0 + $0x8] sm:$0xff]
    %v34 = vld [vmem:[#allocation3] sm:$0xff]
    %v35 = vld [vmem:[#allocation3 + $0x8] sm:$0xff]
    %v36 = vld [vmem:[#allocation3 + $0x10] sm:$0xff]
    %v37 = vld [vmem:[#allocation3 + $0x18] sm:$0xff]
    %v38 = vld [vmem:[#allocation3 + $0x20] sm:$0xff]
    %v39 = vld [vmem:[#allocation3 + $0x28] sm:$0xff]
    %v40 = vld [vmem:[#allocation3 + $0x30] sm:$0xff]
    %v41 = vld [vmem:[#allocation3 + $0x38] sm:$0xff]
    %v42 = vld [vmem:[#allocation3 + $0x40] sm:$0xff]
    %v43 = vld [vmem:[#allocation3 + $0x48] sm:$0xff]
    %v44 = vld [vmem:[#allocation3 + $0x50] sm:$0xff]
    %v45 = vld [vmem:[#allocation3 + $0x58] sm:$0xff]
    %v46 = vld [vmem:[#allocation3 + $0x60] sm:$0xff]
    %v47 = vld [vmem:[#allocation3 + $0x68] sm:$0xff]
    %v48 = vld [vmem:[#allocation3 + $0x70] sm:$0xff]
    %v49 = vld [vmem:[#allocation3 + $0x78] sm:$0xff]
    %v50 = vld [vmem:[#allocation3 + $0x80] sm:$0xff]
    %v51 = vld [vmem:[#allocation3 + $0x88] sm:$0xff]
    %v52 = vld [vmem:[#allocation3 + $0x90] sm:$0xff]
    %v53 = vld [vmem:[#allocation3 + $0x98] sm:$0xff]
    %vm54 = vcmask 261120
    %v56 = vsel %vm54, %v33, 0
    %58 = vmatprep.subr.mxu0 0.0
    %59 = vmatpush1.msra.mxu0 %v34
    %60 = vmatprep.subr.mxu0 0.0
    %61 = vmatpush1.msra.mxu0 %v35
    %62 = vmatprep.subr.mxu0 0.0
    %63 = vmatpush1.msra.mxu0 %v36
    %64 = vmatprep.subr.mxu0 0.0
    %65 = vmatpush1.msra.mxu0 %v37
    %66 = vmatprep.subr.mxu0 0.0
    %67 = vmatpush1.msra.mxu0 %v38
    %68 = vmatprep.subr.mxu0 0.0
    %69 = vmatpush1.msra.mxu0 %v39
    %70 = vmatprep.subr.mxu0 0.0
    %71 = vmatpush1.msra.mxu0 %v40
    %72 = vmatprep.subr.mxu0 0.0
    %73 = vmatpush1.msra.mxu0 %v41
    %74 = vmatprep.subr.mxu0 0.0
    %75 = vmatpush1.msra.mxu0 %v42
    %76 = vmatprep.subr.mxu0 0.0
    %77 = vmatpush1.msra.mxu0 %v43
    %78 = vmatprep.subr.mxu0 0.0
    %79 = vmatpush1.msra.mxu0 %v44
    %80 = vmatprep.subr.mxu0 0.0
    %81 = vmatpush1.msra.mxu0 %v45
    %82 = vmatprep.subr.mxu0 0.0
    %83 = vmatpush1.msra.mxu0 %v46
    %84 = vmatprep.subr.mxu0 0.0
    %85 = vmatpush1.msra.mxu0 %v47
    %86 = vmatprep.subr.mxu0 0.0
    %87 = vmatpush1.msra.mxu0 %v48
    %88 = vmatprep.subr.mxu0 0.0
    %89 = vmatpush1.msra.mxu0 %v49
    %90 = vmatprep.subr.mxu0 0.0
    %91 = vmatpush1.msra.mxu0 %v50
    %92 = vmatprep.subr.mxu0 0.0
    %93 = vmatpush1.msra.mxu0 %v51
    %94 = vmatprep.subr.mxu0 0.0
    %95 = vmatpush1.msra.mxu0 %v52
    %96 = vmatprep.subr.mxu0 0.0
    %97 = vmatpush1.msra.mxu0 %v53
    %98 = vmatprep.subr.mxu0 0.0
    %99 = vmatpush1.msra.mxu0 0.0
    %100 = vmatprep.subr.mxu0 0.0
    %101 = vmatpush1.msra.mxu0 0.0
    %102 = vmatprep.subr.mxu0 0.0
    %103 = vmatpush1.msra.mxu0 0.0
    %104 = vmatprep.subr.mxu0 0.0
    %105 = vmatpush1.msra.mxu0 0.0
    %106 = vmatprep.subr.mxu0 0.0
    %107 = vmatpush1.msra.mxu0 0.0
    %108 = vmatprep.subr.mxu0 0.0
    %109 = vmatpush1.msra.mxu0 0.0
    %110 = vmatprep.subr.mxu0 0.0
    %111 = vmatpush1.msra.mxu0 0.0
    %112 = vmatprep.subr.mxu0 0.0
    %113 = vmatpush1.msra.mxu0 0.0
    %114 = vmatprep.subr.mxu0 0.0
    %115 = vmatpush1.msra.mxu0 0.0
    %116 = vmatprep.subr.mxu0 0.0
    %117 = vmatpush1.msra.mxu0 0.0
    %118 = vmatprep.subr.mxu0 0.0
    %119 = vmatpush1.msra.mxu0 0.0
    %120 = vmatprep.subr.mxu0 0.0
    %121 = vmatpush1.msra.mxu0 0.0
    %122 = vmatprep.mubr.f32.mxu0 %v56
    %123 = vmatmul.mubr.f32.gmra.mrb[0].mxu0 %v32
    %v124 = vpop.f32.mrb[0].mxu0
    %v125 = vadd.f32 0.0, %v124
    %v126 = vpop.f32.mrb[0].mxu0
    %127 = vdwg.mxu0
    %v128 = vadd.f32 %v31, %v125
    %129 = vst [vmem:[#allocation2] sm:$0xff] %v128
    // Predicated region
    $region18: #{forward.1} parent=1 // pred_check
      %p130 = pneg %p26
    $region19: #{forward.1} parent=1 // pred_check_branch
      %132 = sbr.rel (%p130) target = $region21
    $region20: #{forward.1} parent=1 // pred_region
      %v133 = vld [vmem:[#allocation2] sm:$0xff]
      %134 = vst [vmem:[#allocation6] sm:$0xff] %v133
    $region21: #{forward.1} parent=1 // pred_fallthru
      _
    // Predicated region
    $region22: #{forward.1} parent=1 // pred_check
      _
    $region23: #{forward.1} parent=1 // pred_check_branch
      %136 = sbr.rel (0) target = $region25
    $region24: #{forward.1} parent=1 // pred_region
      %s138 = ssub.s32 128, 128
      %139 = vsyncadd [#allocation5], %s138
      %s141 = sshll.u32 [#allocation6], 4
      %s142 = int_to_ptr.vmem [resolvable:$true] %s141
      %144 = dma.vmem_to_hbm [thread:$0]  %s142, 128, %s2, [#allocation5]
    $region25: #{forward.1} parent=1 // pred_fallthru
      _
    // Predicated region
    $region26: #{forward.1} parent=1 // pred_check
      _
    $region27: #{forward.1} parent=1 // pred_check_branch
      %146 = sbr.rel (0) target = $region29
    $region28: #{forward.1} parent=1 // pred_region
      %147 = dma.done [#allocation5], 128
    $region29: #{forward.1} parent=1 // pred_fallthru
      _
    %148 = vsyncpa [#allocation4], 1
    %149 = vsyncpa [#allocation5], 1

</llo_original>
